<compile_context>
chip_gen: v7x
topology: tpu7x:2x2x1
jax: 0.10.0
libtpu: 0.0.40
codegen_flags: <defaults>
</compile_context>

<pallas_src>
import jax
import jax.numpy as jnp
from jax.experimental import pallas as pl
from jax.experimental.pallas import tpu as pltpu

PATCH = 4
LANE = 128


def _round_up(n, m):
    return ((n + m - 1) // m) * m


def _vlm_kernel(patches_ref, w1_ref, b1_ref, w2_ref, b2_ref, out_ref, pooled_sc):
    # One (batch-tile i, vocab-tile j) grid step.
    #   patches_ref: [Bt, P, Fp] bf16  (indexed by i only -> stays resident over j)
    #   w1_ref     : [Fp, H]     bf16
    #   b1_ref     : [1,  H]     f32
    #   w2_ref     : [H,  Vt]    bf16  (indexed by j)
    #   b2_ref     : [1,  Vt]    f32   (prompt embedding already folded in)
    #   out_ref    : [Bt, Vt]    f32
    #   pooled_sc  : [Bt, H]     bf16 scratch, cached across the vocab-tile axis
    j = pl.program_id(1)

    # Patch-embed + pool once per batch tile; reuse for every vocab tile.
    @pl.when(j == 0)
    def _():
        Bt, P, Fp = patches_ref.shape
        H = w1_ref.shape[1]
        x = patches_ref[...].reshape(Bt * P, Fp)                        # bf16
        h = jnp.dot(x, w1_ref[...], preferred_element_type=jnp.float32)
        h = jnp.maximum(h + b1_ref[...], 0.0)                           # f32 VPU math
        # mean over patches == sum + constant multiply (cheaper than mean()).
        pooled = h.reshape(Bt, P, H).sum(axis=1) * (1.0 / P)
        pooled_sc[...] = pooled.astype(jnp.bfloat16)                    # bf16 MXU operand

    # Output projection tile (MXU) + folded bias, then output_filter_fn (ReLU).
    logits = jnp.dot(pooled_sc[...], w2_ref[...],
                     preferred_element_type=jnp.float32) + b2_ref[...]
    out_ref[...] = jnp.maximum(logits, 0.0)


def _extract_patches(x_nchw, f_pad):
    """NCHW -> [B, P, F_pad] bf16 patches (F on lanes, zero-padded to 128)."""
    # TODO(synk): at real image sizes this rearrange should be done with strided
    # in-kernel DMA (memory_space=pl.ANY) instead of a host-side XLA 6-D transpose.
    B, C, Hi, Wi = x_nchw.shape
    nph, npw = Hi // PATCH, Wi // PATCH
    p = (
        x_nchw.reshape(B, C, nph, PATCH, npw, PATCH)
        .transpose(0, 2, 4, 1, 3, 5)
        .reshape(B, nph * npw, C * PATCH * PATCH)
    )
    f = p.shape[-1]
    if f_pad > f:
        p = jnp.pad(p, ((0, 0), (0, 0), (0, f_pad - f)))
    return p.astype(jnp.bfloat16)


def vlm_forward(x_nchw, params, system_prompt_embed, prompt_embed=None,
                *, b_tile=None, v_tile=LANE):
    """VLMBase.forward: uses `prompt_embed` override if given, else the system prompt."""
    pe = system_prompt_embed if prompt_embed is None else prompt_embed

    w1, b1, w2, b2 = params["w1"], params["b1"], params["w2"], params["b2"]
    F_pad, H = w1.shape
    V = w2.shape[1]
    B = x_nchw.shape[0]
    P = (x_nchw.shape[2] // PATCH) * (x_nchw.shape[3] // PATCH)

    patches = _extract_patches(x_nchw, F_pad)

    # Fold the constant-per-call prompt embedding into the output bias:
    #   (mean + prompt) @ w2 + b2 == mean @ w2 + (prompt @ w2 + b2)
    b2_eff = (pe @ w2.astype(jnp.float32) + b2).astype(jnp.float32)

    if b_tile is None:
        b_tile = B
    assert B % b_tile == 0 and V % v_tile == 0
    grid = (B // b_tile, V // v_tile)

    return pl.pallas_call(
        _vlm_kernel,
        out_shape=jax.ShapeDtypeStruct((B, V), jnp.float32),
        grid_spec=pltpu.PrefetchScalarGridSpec(
            num_scalar_prefetch=0,
            grid=grid,
            in_specs=[
                pl.BlockSpec((b_tile, P, F_pad), lambda i, j: (i, 0, 0)),  # patches
                pl.BlockSpec((F_pad, H), lambda i, j: (0, 0)),             # w1 (bf16)
                pl.BlockSpec((1, H), lambda i, j: (0, 0)),                 # b1
                pl.BlockSpec((H, v_tile), lambda i, j: (0, j)),            # w2 tile (bf16)
                pl.BlockSpec((1, v_tile), lambda i, j: (0, j)),            # b2_eff tile
            ],
            out_specs=pl.BlockSpec((b_tile, v_tile), lambda i, j: (i, j)),
            scratch_shapes=[pltpu.VMEM((b_tile, H), jnp.bfloat16)],
        ),
        compiler_params=pltpu.CompilerParams(
            # Batch tiles are independent -> "parallel" (v7x megacore sharding).
            # Vocab axis is "arbitrary": pooled activations are cached in scratch
            # across vocab tiles (computed once at j == 0).
            dimension_semantics=("parallel", "arbitrary"),
            vmem_limit_bytes=32 * 1024 * 1024,  # well inside v7x's 64 MiB physical VMEM
        ),
    )(patches, w1, b1, w2, b2_eff)


def make_params(C, hidden, vocab):
    """Deterministic synthetic parameters (no checkpoint load). Weights ship as bf16."""
    F = C * PATCH * PATCH
    F_pad = _round_up(F, LANE)
    k1, k2 = jax.random.split(jax.random.PRNGKey(42))
    w1 = jax.random.normal(k1, (F, hidden), jnp.float32) * 0.05
    w1 = jnp.pad(w1, ((0, F_pad - F), (0, 0))).astype(jnp.bfloat16)
    b1 = jnp.zeros((1, hidden), jnp.float32)
    w2 = (jax.random.normal(k2, (hidden, vocab), jnp.float32) * 0.05).astype(jnp.bfloat16)
    b2 = jnp.full((1, vocab), 0.01, jnp.float32)
    return {"w1": w1, "b1": b1, "w2": w2, "b2": b2}


def prompt_to_embedding(prompt: str, hidden: int):
    """Deterministic embedding of the (string) system prompt."""
    seed = sum(ord(c) for c in prompt) % (2**31 - 1)
    return jax.random.normal(jax.random.PRNGKey(seed), (1, hidden), jnp.float32) * 0.1


def reference_forward(x_nchw, params, prompt_embed):
    """Pure-JAX reference, math-identical to VLMBase.forward with the same bf16
    MXU-input cast points as the kernel."""
    F_pad = params["w1"].shape[0]
    patches = _extract_patches(x_nchw, F_pad).astype(jnp.float32)
    w1 = params["w1"].astype(jnp.float32)
    w2 = params["w2"].astype(jnp.float32)
    h = jnp.maximum(patches @ w1 + params["b1"], 0.0)
    P = patches.shape[1]
    pooled = (h.sum(axis=1) * (1.0 / P)).astype(jnp.bfloat16).astype(jnp.float32)
    logits = pooled @ w2 + (prompt_embed @ w2 + params["b2"])
    return jnp.maximum(logits, 0.0)


if __name__ == "__main__":
    B, C, Hi, Wi = 2, 4, 16, 16          # small NCHW image input
    HIDDEN, VOCAB = 128, 256             # lane-dense (multiples of 128)

    key = jax.random.PRNGKey(0)
    x = jax.random.normal(key, (B, C, Hi, Wi), jnp.float32)

    params = make_params(C, HIDDEN, VOCAB)
    system_prompt = "Describe the image."
    sys_embed = prompt_to_embedding(system_prompt, HIDDEN)

    out = vlm_forward(x, params, sys_embed)
    out = jax.block_until_ready(out)

    ref = reference_forward(x, params, sys_embed)
    assert out.shape == (B, VOCAB)
    assert jnp.allclose(out, ref, atol=2e-3, rtol=2e-3), float(jnp.max(jnp.abs(out - ref)))

    print("KERNEL_OK")
</pallas_src>

<mosaic_0001>
module attributes {stable_mosaic.version = 11 : i64} {
  func.func @_vlm_kernel(%arg0: i32, %arg1: i32, %arg2: memref<2x16x128xbf16, #tpu.memory_space<vmem>>, %arg3: memref<128x128xbf16, #tpu.memory_space<vmem>>, %arg4: memref<1x128xf32, #tpu.memory_space<vmem>>, %arg5: memref<128x128xbf16, #tpu.memory_space<vmem>>, %arg6: memref<1x128xf32, #tpu.memory_space<vmem>>, %arg7: memref<2x128xf32, #tpu.memory_space<vmem>>, %arg8: memref<2x128xbf16, #tpu.memory_space<vmem>>) attributes {dimension_semantics = [#tpu.dimension_semantics<parallel>, #tpu.dimension_semantics<arbitrary>], iteration_bounds = array<i64: 1, 2>, scalar_prefetch = 0 : i64, scratch_operands = 1 : i64, tpu.core_type = #tpu.core_type<tc>, window_params = [{transform_indices = @transform_0, window_bounds = array<i64: 2, 16, 128>}, {pipeline_mode = #tpu.pipeline_mode<synchronous>, transform_indices = @transform_1, window_bounds = array<i64: 128, 128>}, {pipeline_mode = #tpu.pipeline_mode<synchronous>, transform_indices = @transform_2, window_bounds = array<i64: 1, 128>}, {transform_indices = @transform_3, window_bounds = array<i64: 128, 128>}, {transform_indices = @transform_4, window_bounds = array<i64: 1, 128>}, {transform_indices = @transform_5, window_bounds = array<i64: 2, 128>}]} {
    %c0_i32 = arith.constant 0 : i32
    %0 = arith.cmpi eq, %arg1, %c0_i32 : i32
    %1 = arith.extui %0 : i1 to i32
    %c0_i32_0 = arith.constant 0 : i32
    %2 = arith.cmpi ne, %1, %c0_i32_0 : i32
    scf.if %2 {
      %c0_9 = arith.constant 0 : index
      %c0_10 = arith.constant 0 : index
      %c0_11 = arith.constant 0 : index
      %12 = vector.load %arg2[%c0_9, %c0_10, %c0_11] : memref<2x16x128xbf16, #tpu.memory_space<vmem>>, vector<2x16x128xbf16>
      %13 = vector.shape_cast %12 : vector<2x16x128xbf16> to vector<32x128xbf16>
      %c0_12 = arith.constant 0 : index
      %c0_13 = arith.constant 0 : index
      %14 = vector.load %arg3[%c0_12, %c0_13] : memref<128x128xbf16, #tpu.memory_space<vmem>>, vector<128x128xbf16>
      %cst_14 = arith.constant dense<0.000000e+00> : vector<32x128xf32>
      %15 = tpu.matmul %13, %14, %cst_14 {dimension_numbers = #tpu.dot_dimension_numbers<[1], [0], [0], [1], [0, 0, 1, 1], [], []>} : vector<32x128xbf16>, vector<128x128xbf16>, vector<32x128xf32> -> vector<32x128xf32>
      %c0_15 = arith.constant 0 : index
      %c0_16 = arith.constant 0 : index
      %16 = vector.load %arg4[%c0_15, %c0_16] : memref<1x128xf32, #tpu.memory_space<vmem>>, vector<1x128xf32>
      %17 = vector.broadcast %16 : vector<1x128xf32> to vector<32x128xf32>
      %18 = arith.addf %15, %17 : vector<32x128xf32>
      %cst_17 = arith.constant 0.000000e+00 : f32
      %19 = vector.broadcast %cst_17 : f32 to vector<32x128xf32>
      %20 = arith.maximumf %18, %19 : vector<32x128xf32>
      %21 = vector.shape_cast %20 : vector<32x128xf32> to vector<2x16x128xf32>
      %cst_18 = arith.constant dense<0.000000e+00> : vector<2x128xf32>
      %22 = vector.multi_reduction <add>, %21, %cst_18 [1] : vector<2x16x128xf32> to vector<2x128xf32>
      %cst_19 = arith.constant 6.250000e-02 : f32
      %23 = vector.broadcast %cst_19 : f32 to vector<2x128xf32>
      %24 = arith.mulf %22, %23 : vector<2x128xf32>
      %25 = arith.truncf %24 : vector<2x128xf32> to vector<2x128xbf16>
      %c0_20 = arith.constant 0 : index
      %c0_21 = arith.constant 0 : index
      %26 = vector.load %arg8[%c0_20, %c0_21] : memref<2x128xbf16, #tpu.memory_space<vmem>>, vector<2x128xbf16>
      tpu.vector_store %arg8[%c0_20, %c0_21], %25 {strides = array<i32>} : memref<2x128xbf16, #tpu.memory_space<vmem>>, vector<2x128xbf16>,
    } else {
    }
    %c0 = arith.constant 0 : index
    %c0_1 = arith.constant 0 : index
    %3 = vector.load %arg8[%c0, %c0_1] : memref<2x128xbf16, #tpu.memory_space<vmem>>, vector<2x128xbf16>
    %c0_2 = arith.constant 0 : index
    %c0_3 = arith.constant 0 : index
    %4 = vector.load %arg5[%c0_2, %c0_3] : memref<128x128xbf16, #tpu.memory_space<vmem>>, vector<128x128xbf16>
    %cst = arith.constant dense<0.000000e+00> : vector<2x128xf32>
    %5 = tpu.matmul %3, %4, %cst {dimension_numbers = #tpu.dot_dimension_numbers<[1], [0], [0], [1], [0, 0, 1, 1], [], []>} : vector<2x128xbf16>, vector<128x128xbf16>, vector<2x128xf32> -> vector<2x128xf32>
    %c0_4 = arith.constant 0 : index
    %c0_5 = arith.constant 0 : index
    %6 = vector.load %arg6[%c0_4, %c0_5] : memref<1x128xf32, #tpu.memory_space<vmem>>, vector<1x128xf32>
    %7 = vector.broadcast %6 : vector<1x128xf32> to vector<2x128xf32>
    %8 = arith.addf %5, %7 : vector<2x128xf32>
    %cst_6 = arith.constant 0.000000e+00 : f32
    %9 = vector.broadcast %cst_6 : f32 to vector<2x128xf32>
    %10 = arith.maximumf %8, %9 : vector<2x128xf32>
    %c0_7 = arith.constant 0 : index
    %c0_8 = arith.constant 0 : index
    %11 = vector.load %arg7[%c0_7, %c0_8] : memref<2x128xf32, #tpu.memory_space<vmem>>, vector<2x128xf32>
    tpu.vector_store %arg7[%c0_7, %c0_8], %10 {strides = array<i32>} : memref<2x128xf32, #tpu.memory_space<vmem>>, vector<2x128xf32>,
    return
  }
  func.func @transform_0(%arg0: i32, %arg1: i32) -> (i32, i32, i32) {
    %c0_i32 = arith.constant 0 : i32
    %c0_i32_0 = arith.constant 0 : i32
    %c0_i32_1 = arith.constant 0 : i32
    return %arg0, %c0_i32, %c0_i32_0 : i32, i32, i32
  }
  func.func @transform_1(%arg0: i32, %arg1: i32) -> (i32, i32) {
    %c0_i32 = arith.constant 0 : i32
    %c0_i32_0 = arith.constant 0 : i32
    %c0_i32_1 = arith.constant 0 : i32
    return %c0_i32, %c0_i32_0 : i32, i32
  }
  func.func @transform_2(%arg0: i32, %arg1: i32) -> (i32, i32) {
    %c0_i32 = arith.constant 0 : i32
    %c0_i32_0 = arith.constant 0 : i32
    %c0_i32_1 = arith.constant 0 : i32
    return %c0_i32, %c0_i32_0 : i32, i32
  }
  func.func @transform_3(%arg0: i32, %arg1: i32) -> (i32, i32) {
    %c0_i32 = arith.constant 0 : i32
    %c0_i32_0 = arith.constant 0 : i32
    return %c0_i32, %arg1 : i32, i32
  }
  func.func @transform_4(%arg0: i32, %arg1: i32) -> (i32, i32) {
    %c0_i32 = arith.constant 0 : i32
    %c0_i32_0 = arith.constant 0 : i32
    return %c0_i32, %arg1 : i32, i32
  }
  func.func @transform_5(%arg0: i32, %arg1: i32) -> (i32, i32) {
    %c0_i32 = arith.constant 0 : i32
    return %arg0, %arg1 : i32, i32
  }
}

</mosaic_0001>

<llo_original>
// kernel: tpu_custom_call.1
$region0: #{tpu_custom_call.1}
  #allocation0 [shape = 'u32[]', space=smem, size = 0x4, offset = 0x4, fixed_abs, tag = 'smem constant byte address 0x4 - core index']
  #allocation1 [shape = 'u32[144,128]{1,0:T(1,128)}', space=vmem, size = 0x12000, scoped, tag = 'internal scratch']
  #allocation2 [shape = 'bf16[2,128]{1,0:T(2,128)(2,1)}', space=vmem, size = 0x200, scoped, tag = 'scratch operand']
  %s0 = inlined_call_operand.hbm [shape: bf16[2,16,128], index: 0, kind: input, shape index: {}]
  %s1 = inlined_call_operand.hbm [shape: bf16[128,128], index: 1, kind: input, shape index: {}]
  %s2 = inlined_call_operand.vmem [shape: f32[1,128], index: 2, kind: input, shape index: {}]
  %s3 = inlined_call_operand.hbm [shape: bf16[128,256], index: 3, kind: input, shape index: {}]
  %s4 = inlined_call_operand.vmem [shape: f32[1,256], index: 4, kind: input, shape index: {}]
  %s5 = inlined_call_operand.hbm [shape: f32[2,256], index: 5, kind: output, shape index: {}]
  %s6 = sld [smem:[#allocation0]]
  $region69: #{tpu_custom_call.1} parent=0
    _
  %s8 = ssub.s32 1, %s6
  %s9 = scalar_select 0, %s8, %s6
  $region1: #{tpu_custom_call.1} parent=0
    #allocation3 [shape = 'u8[8192]{0}', space=vmem, size = 0x2000, scoped, tag = 'input window, operand 0, single buffered']
    #allocation4 [shape = 's32[2]{0}', space=sflag, size = 0x8, scoped, tag = 'scoped memory for tpu_custom_call.1']
    #allocation5 [shape = 's32[2]{0}', space=sflag, size = 0x8, scoped, tag = 'scoped memory for tpu_custom_call.1']
    #allocation6 [shape = 'u8[32768]{0}', space=vmem, size = 0x8000, scoped, tag = 'input window, operand 1, single buffered']
    #allocation7 [shape = 's32[1]{0}', space=sflag, size = 0x4, scoped, tag = 'scoped memory for tpu_custom_call.1']
    #allocation8 [shape = 'u8[65536]{0}', space=vmem, size = 0x10000, scoped, tag = 'input window, operand 3']
    #allocation9 [shape = 'u8[2048]{0}', space=vmem, size = 0x800, scoped, tag = 'output window, operand 0']
    %10 = vsyncpa [#allocation4], 0
    %11 = vsyncpa [#allocation7], 0
    %12 = vsyncpa [#allocation5], 0
    %s13 = scalar_lea.sflag [#allocation5], 1
    %14 = vsyncpa %s13, 0
    loop: start=0, step=1, limit=4
    $region2: #{tpu_custom_call.1} parent=1 // loop_pre_header
      _
    $region3: #{tpu_custom_call.1} parent=1 // loop_header
      %s16 = sphi 0, %s20
      %p17 = scmp.ge.s32.totalorder %s16, 4
      %s23 = sphi 0, %s35
      %s24 = sphi 0, %s31
      %s25 = sphi 0, %s23
      %s26 = sphi 0, %s24
      %s27 = sphi 0, %s25
      %s28 = sphi 0, %s26
      %s38 = sphi 0, %s40
      %s41 = sphi 0, %s38
      %s42 = sphi 0, %s41
      %s58 = sphi 0, %s42
      %s62 = sphi 0, %s62
      %s64 = sphi 0, %s62
      %s65 = sphi 0, %s64
      %s79 = sphi 0, %s65
      %s83 = sphi 0, %s83
      %s85 = sphi 0, %s83
      %s86 = sphi 0, %s85
      %s100 = sphi 0, %s86
      %s106 = sphi 0, %s108
      %s109 = sphi 0, %s106
      %s110 = sphi 0, %s109
      %s126 = sphi 0, %s110
      %s132 = sphi 0, %s134
      %s135 = sphi 0, %s132
      %s136 = sphi 0, %s135
      %s152 = sphi 0, %s136
      %s160 = sphi 0, %s162
      %s163 = sphi 0, %s160
      %s164 = sphi 0, %s163
      %s180 = sphi 0, %s164
    $region4: #{tpu_custom_call.1} parent=1 // loop_header_branch
      %19 = sbr.rel (%p17) target = $region8
    $region5: #{tpu_custom_call.1} parent=1 // loop_body
      %s21 = ssub.s32 %s16, 1
      %s22 = ssub.s32 %s16, 2
      %s29 = sadd.s32 1, %s24
      %p30 = scmp.ge.s32.totalorder %s29, 2
      %s31 = scalar_select %p30, 0, %s29
      %s32 = sadd.s32 1, %s23
      %s33 = scalar_select %p30, %s32, %s23
      %p34 = scmp.ge.s32.totalorder %s33, 1
      %s35 = scalar_select %p34, 0, %s33
      %s36 = ssub.s32 %s23, %s35
      %p37 = scmp.eq.s32.totalorder %s36, 0
      %s39 = sadd.s32 %s38, 1
      %s40 = scalar_select %p37, %s38, %s39
      %p43 = pneg %p37
      %p44 = scmp.eq.s32.totalorder %s16, 1
      %p45 = por %p43, %p44
      %p46 = scmp.ne.s32.totalorder %s38, %s41
      %p47 = scmp.eq.s32.totalorder %s16, 0
      %p48 = por %p46, %p47
      %p49 = scmp.ne.s32.totalorder %s38, %s41
      %p50 = scmp.eq.s32.totalorder %s21, 1
      %p51 = por %p49, %p50
      %p52 = scmp.ne.s32.totalorder %s41, %s42
      %p53 = scmp.eq.s32.totalorder %s21, 0
      %p54 = por %p52, %p53
      %p55 = scmp.ne.s32.totalorder %s41, %s42
      %p56 = scmp.eq.s32.totalorder %s22, 1
      %p57 = por %p55, %p56
      %p59 = scmp.ne.s32.totalorder %s42, %s58
      %p60 = scmp.eq.s32.totalorder %s22, 0
      %p61 = por %p59, %p60
      %s63 = sadd.s32 %s62, 1
      %p66 = scmp.eq.s32.totalorder %s16, 1
      %p67 = scmp.ne.s32.totalorder %s62, %s64
      %p68 = scmp.eq.s32.totalorder %s16, 0
      %p69 = por %p67, %p68
      %p70 = scmp.ne.s32.totalorder %s62, %s64
      %p71 = scmp.eq.s32.totalorder %s21, 1
      %p72 = por %p70, %p71
      %p73 = scmp.ne.s32.totalorder %s64, %s65
      %p74 = scmp.eq.s32.totalorder %s21, 0
      %p75 = por %p73, %p74
      %p76 = scmp.ne.s32.totalorder %s64, %s65
      %p77 = scmp.eq.s32.totalorder %s22, 1
      %p78 = por %p76, %p77
      %p80 = scmp.ne.s32.totalorder %s65, %s79
      %p81 = scmp.eq.s32.totalorder %s22, 0
      %p82 = por %p80, %p81
      %s84 = sadd.s32 %s83, 1
      %p87 = scmp.eq.s32.totalorder %s16, 1
      %p88 = scmp.ne.s32.totalorder %s83, %s85
      %p89 = scmp.eq.s32.totalorder %s16, 0
      %p90 = por %p88, %p89
      %p91 = scmp.ne.s32.totalorder %s83, %s85
      %p92 = scmp.eq.s32.totalorder %s21, 1
      %p93 = por %p91, %p92
      %p94 = scmp.ne.s32.totalorder %s85, %s86
      %p95 = scmp.eq.s32.totalorder %s21, 0
      %p96 = por %p94, %p95
      %p97 = scmp.ne.s32.totalorder %s85, %s86
      %p98 = scmp.eq.s32.totalorder %s22, 1
      %p99 = por %p97, %p98
      %p101 = scmp.ne.s32.totalorder %s86, %s100
      %p102 = scmp.eq.s32.totalorder %s22, 0
      %p103 = por %p101, %p102
      %s104 = ssub.s32 %s24, %s31
      %p105 = scmp.eq.s32.totalorder %s104, 0
      %s107 = sadd.s32 %s106, 1
      %s108 = scalar_select %p105, %s106, %s107
      %p111 = pneg %p105
      %p112 = scmp.eq.s32.totalorder %s16, 1
      %p113 = por %p111, %p112
      %p114 = scmp.ne.s32.totalorder %s106, %s109
      %p115 = scmp.eq.s32.totalorder %s16, 0
      %p116 = por %p114, %p115
      %p117 = scmp.ne.s32.totalorder %s106, %s109
      %p118 = scmp.eq.s32.totalorder %s21, 1
      %p119 = por %p117, %p118
      %p120 = scmp.ne.s32.totalorder %s109, %s110
      %p121 = scmp.eq.s32.totalorder %s21, 0
      %p122 = por %p120, %p121
      %p123 = scmp.ne.s32.totalorder %s109, %s110
      %p124 = scmp.eq.s32.totalorder %s22, 1
      %p125 = por %p123, %p124
      %p127 = scmp.ne.s32.totalorder %s110, %s126
      %p128 = scmp.eq.s32.totalorder %s22, 0
      %p129 = por %p127, %p128
      %s130 = ssub.s32 %s24, %s31
      %p131 = scmp.eq.s32.totalorder %s130, 0
      %s133 = sadd.s32 %s132, 1
      %s134 = scalar_select %p131, %s132, %s133
      %p137 = pneg %p131
      %p138 = scmp.eq.s32.totalorder %s16, 1
      %p139 = por %p137, %p138
      %p140 = scmp.ne.s32.totalorder %s132, %s135
      %p141 = scmp.eq.s32.totalorder %s16, 0
      %p142 = por %p140, %p141
      %p143 = scmp.ne.s32.totalorder %s132, %s135
      %p144 = scmp.eq.s32.totalorder %s21, 1
      %p145 = por %p143, %p144
      %p146 = scmp.ne.s32.totalorder %s135, %s136
      %p147 = scmp.eq.s32.totalorder %s21, 0
      %p148 = por %p146, %p147
      %p149 = scmp.ne.s32.totalorder %s135, %s136
      %p150 = scmp.eq.s32.totalorder %s22, 1
      %p151 = por %p149, %p150
      %p153 = scmp.ne.s32.totalorder %s136, %s152
      %p154 = scmp.eq.s32.totalorder %s22, 0
      %p155 = por %p153, %p154
      %s156 = ssub.s32 %s23, %s35
      %s157 = ssub.s32 %s24, %s31
      %s158 = sor.u32 %s156, %s157
      %p159 = scmp.eq.s32.totalorder %s158, 0
      %s161 = sadd.s32 %s160, 1
      %s162 = scalar_select %p159, %s160, %s161
      %p165 = pneg %p159
      %p166 = scmp.eq.s32.totalorder %s16, 1
      %p167 = por %p165, %p166
      %p168 = scmp.ne.s32.totalorder %s160, %s163
      %p169 = scmp.eq.s32.totalorder %s16, 0
      %p170 = por %p168, %p169
      %p171 = scmp.ne.s32.totalorder %s160, %s163
      %p172 = scmp.eq.s32.totalorder %s21, 1
      %p173 = por %p171, %p172
      %p174 = scmp.ne.s32.totalorder %s163, %s164
      %p175 = scmp.eq.s32.totalorder %s21, 0
      %p176 = por %p174, %p175
      %p177 = scmp.ne.s32.totalorder %s163, %s164
      %p178 = scmp.eq.s32.totalorder %s22, 1
      %p179 = por %p177, %p178
      %p181 = scmp.ne.s32.totalorder %s164, %s180
      %p182 = scmp.eq.s32.totalorder %s22, 0
      %p183 = por %p181, %p182
      %p184 = scmp.le.s32.totalorder 1, %s16
      %p185 = scmp.lt.s32.totalorder %s16, 3
      %p186 = pnand %p184, %p185
      %p187 = pneg %p186
      // Predicated region
      $region9: #{tpu_custom_call.1} parent=5 // pred_check
        _
      $region10: #{tpu_custom_call.1} parent=5 // pred_check_branch
        %189 = sbr.rel (%p186) target = $region12
      $region11: #{tpu_custom_call.1} parent=5 // pred_region
        %s190 = ssub.s32 %s16, 1
        // Predicated region
        $region13: #{tpu_custom_call.1} parent=11 // pred_check
          %p191 = pneg %p54
        $region14: #{tpu_custom_call.1} parent=11 // pred_check_branch
          %193 = sbr.rel (%p191) target = $region16
        $region15: #{tpu_custom_call.1} parent=11 // pred_region
          %s194 = smul.u32 2, %s25
          %s196 = ssub.s32 256, 256
          %197 = vsyncadd [#allocation4], %s196
          %s198 = smul.addr %s194, 2
          %s199 = smul.addr %s198, 64
          %s200 = scalar_lea.hbm %s0, %s199
          %s201 = sshll.u32 [#allocation3], 4
          %s202 = int_to_ptr.vmem [resolvable:$true] %s201
          %207 = dma.hbm_to_vmem [thread:$0]  %s200, 256, %s202, [#allocation4], 64, 64, 4
        $region16: #{tpu_custom_call.1} parent=11 // pred_fallthru
          _
        // Predicated region
        $region17: #{tpu_custom_call.1} parent=11 // pred_check
          %p208 = pneg %p75
        $region18: #{tpu_custom_call.1} parent=11 // pred_check_branch
          %210 = sbr.rel (%p208) target = $region20
        $region19: #{tpu_custom_call.1} parent=11 // pred_region
          %s212 = ssub.s32 1024, 1024
          %213 = vsyncadd [#allocation7], %s212
          %s214 = sshll.u32 [#allocation6], 4
          %s215 = int_to_ptr.vmem [resolvable:$true] %s214
          %220 = dma.hbm_to_vmem [thread:$0]  %s1, 1024, %s215, [#allocation7], 64, 64, 4
        $region20: #{tpu_custom_call.1} parent=11 // pred_fallthru
          _
        // Predicated region
        $region21: #{tpu_custom_call.1} parent=11 // pred_check
          %p221 = pneg %p96
        $region22: #{tpu_custom_call.1} parent=11 // pred_check_branch
          %223 = sbr.rel (%p221) target = $region24
        $region23: #{tpu_custom_call.1} parent=11 // pred_region
          _
        $region24: #{tpu_custom_call.1} parent=11 // pred_fallthru
          _
      $region12: #{tpu_custom_call.1} parent=5 // pred_fallthru
        _
      %p224 = scmp.lt.s32.totalorder %s16, 2
      // Predicated region
      $region25: #{tpu_custom_call.1} parent=5 // pred_check
        %p225 = pneg %p224
      $region26: #{tpu_custom_call.1} parent=5 // pred_check_branch
        %227 = sbr.rel (%p225) target = $region28
      $region27: #{tpu_custom_call.1} parent=5 // pred_region
        // Predicated region
        $region29: #{tpu_custom_call.1} parent=27 // pred_check
          %p228 = pneg %p116
        $region30: #{tpu_custom_call.1} parent=27 // pred_check_branch
          %230 = sbr.rel (%p228) target = $region32
        $region31: #{tpu_custom_call.1} parent=27 // pred_region
          %s231 = sand.u32 %s16, 1
          %s232 = scalar_lea.sflag [#allocation4], %s231
          %s233 = sand.u32 %s106, 1
          %s234 = smul.addr %s233, 64
          %s235 = scalar_lea.vmem [#allocation8], %s234
          %s237 = ssub.s32 1024, 1024
          %238 = vsyncadd %s232, %s237
          %s239 = smul.addr %s24, 64
          %s240 = scalar_lea.hbm %s3, %s239
          %s241 = sshll.u32 %s235, 4
          %s242 = int_to_ptr.vmem [resolvable:$true] %s241
          %247 = dma.hbm_to_vmem [thread:$0]  %s240, 1024, %s242, %s232, 128, 64, 4
        $region32: #{tpu_custom_call.1} parent=27 // pred_fallthru
          _
        // Predicated region
        $region33: #{tpu_custom_call.1} parent=27 // pred_check
          %p248 = pneg %p142
        $region34: #{tpu_custom_call.1} parent=27 // pred_check_branch
          %250 = sbr.rel (%p248) target = $region36
        $region35: #{tpu_custom_call.1} parent=27 // pred_region
          %p251 = scmp.lt.s32.totalorder %s24, 1
          %s252 = scalar_select %p251, %s24, 1
          %s253 = scalar_lea.vmem %s4, %s252
        $region36: #{tpu_custom_call.1} parent=27 // pred_fallthru
          _
      $region28: #{tpu_custom_call.1} parent=5 // pred_fallthru
        _
      %p254 = scmp.le.s32.totalorder 1, %s16
      %p255 = scmp.lt.s32.totalorder %s16, 3
      %p256 = pnand %p254, %p255
      %p257 = pneg %p256
      // Predicated region
      $region37: #{tpu_custom_call.1} parent=5 // pred_check
        _
      $region38: #{tpu_custom_call.1} parent=5 // pred_check_branch
        %259 = sbr.rel (%p256) target = $region40
      $region39: #{tpu_custom_call.1} parent=5 // pred_region
        %s260 = ssub.s32 %s16, 1
        // Predicated region
        $region41: #{tpu_custom_call.1} parent=39 // pred_check
          %p261 = pneg %p54
        $region42: #{tpu_custom_call.1} parent=39 // pred_check_branch
          %263 = sbr.rel (%p261) target = $region44
        $region43: #{tpu_custom_call.1} parent=39 // pred_region
          %264 = dma.done [#allocation4], 256
        $region44: #{tpu_custom_call.1} parent=39 // pred_fallthru
          _
        // Predicated region
        $region45: #{tpu_custom_call.1} parent=39 // pred_check
          %p265 = pneg %p75
        $region46: #{tpu_custom_call.1} parent=39 // pred_check_branch
          %267 = sbr.rel (%p265) target = $region48
        $region47: #{tpu_custom_call.1} parent=39 // pred_region
          %268 = dma.done [#allocation7], 1024
        $region48: #{tpu_custom_call.1} parent=39 // pred_fallthru
          _
        %s269 = sand.u32 %s21, 1
        %s270 = scalar_lea.sflag [#allocation4], %s269
        %s271 = sand.u32 %s109, 1
        %s272 = smul.addr %s271, 64
        %s273 = scalar_lea.vmem [#allocation8], %s272
        // Predicated region
        $region49: #{tpu_custom_call.1} parent=39 // pred_check
          %p274 = pneg %p122
        $region50: #{tpu_custom_call.1} parent=39 // pred_check_branch
          %276 = sbr.rel (%p274) target = $region52
        $region51: #{tpu_custom_call.1} parent=39 // pred_region
          %277 = dma.done %s270, 1024
        $region52: #{tpu_custom_call.1} parent=39 // pred_fallthru
          _
        %p278 = pneg %p54
        %p279 = pneg %p51
        %p280 = pneg %p75
        %p281 = pneg %p72
        %p282 = pneg %p96
        %p283 = pneg %p93
        %s284 = sand.u32 %s21, 1
        %s285 = scalar_lea.sflag [#allocation4], %s284
        %s286 = sand.u32 %s109, 1
        %s287 = smul.addr %s286, 64
        %s288 = scalar_lea.vmem [#allocation8], %s287
        %p289 = pneg %p122
        %p290 = pneg %p119
        %p291 = scmp.lt.s32.totalorder %s26, 1
        %s292 = scalar_select %p291, %s26, 1
        %s293 = scalar_lea.vmem %s4, %s292
        %p294 = pneg %p148
        %p295 = pneg %p145
        %p296 = pneg %p176
        %p297 = pneg %p173
        %s298 = sand.u32 %s163, 1
        %s299 = scalar_lea.sflag [#allocation5], %s298
        %s300 = sand.u32 %s163, 1
        %s301 = smul.addr %s300, 2
        %s302 = scalar_lea.vmem [#allocation9], %s301
        %s303 = smul.u32 2, %s25
        %p304 = scmp.lt.s32.totalorder %s26, 1
        %s305 = scalar_select %p304, %s26, 1
        %s306 = scalar_lea.vmem %s4, %s305
        %p308 = scmp.eq.s32.totalorder %s26, 0
        // Predicated region
        $region53: #{tpu_custom_call.1} parent=39 // pred_check
          %p309 = pneg %p308
        $region54: #{tpu_custom_call.1} parent=39 // pred_check_branch
          %311 = sbr.rel (%p309) target = $region56
        $region55: #{tpu_custom_call.1} parent=39 // pred_region
          %v312 = vld [vmem:[#allocation3] sm:$0xf]
          %v313 = vld [vmem:[#allocation3 + $0x4] sm:$0xf]
          %v314 = vld [vmem:[#allocation3 + $0x8] sm:$0xf]
          %v315 = vld [vmem:[#allocation3 + $0xc] sm:$0xf]
          %v316 = vld [vmem:[#allocation6] sm:$0xf]
          %v317 = vld [vmem:[#allocation6 + $0x4] sm:$0xf]
          %v318 = vld [vmem:[#allocation6 + $0x8] sm:$0xf]
          %v319 = vld [vmem:[#allocation6 + $0xc] sm:$0xf]
          %v320 = vld [vmem:[#allocation6 + $0x10] sm:$0xf]
          %v321 = vld [vmem:[#allocation6 + $0x14] sm:$0xf]
          %v322 = vld [vmem:[#allocation6 + $0x18] sm:$0xf]
          %v323 = vld [vmem:[#allocation6 + $0x1c] sm:$0xf]
          %v324 = vld [vmem:[#allocation6 + $0x20] sm:$0xf]
          %v325 = vld [vmem:[#allocation6 + $0x24] sm:$0xf]
          %v326 = vld [vmem:[#allocation6 + $0x28] sm:$0xf]
          %v327 = vld [vmem:[#allocation6 + $0x2c] sm:$0xf]
          %v328 = vld [vmem:[#allocation6 + $0x30] sm:$0xf]
          %v329 = vld [vmem:[#allocation6 + $0x34] sm:$0xf]
          %v330 = vld [vmem:[#allocation6 + $0x38] sm:$0xf]
          %v331 = vld [vmem:[#allocation6 + $0x3c] sm:$0xf]
          %v332 = vld [vmem:[%s2] sm:$0x1]
          %v334 = vlaneseq
          %v335 = vshrl.u32 %v334, 7
          %v336 = vsub.s32 0, %v335
          %v337 = vrot.slane %v332, %v336
          %v343 = vunpack.c.l.b16 %v312
          %v344 = vunpack.c.l.b16 %v313
          %v345 = vunpack.c.l.b16 %v314
          %v346 = vunpack.c.l.b16 %v315
          %v347 = vpack.c.b16 %v344, %v343
          %v348 = vpack.c.b16 %v346, %v345
          %v367 = vunpack.c.l.b16 %v316
          %v368 = vunpack.c.l.b16 %v317
          %v369 = vunpack.c.l.b16 %v318
          %v370 = vunpack.c.l.b16 %v319
          %v371 = vunpack.c.l.b16 %v320
          %v372 = vunpack.c.l.b16 %v321
          %v373 = vunpack.c.l.b16 %v322
          %v374 = vunpack.c.l.b16 %v323
          %v375 = vunpack.c.l.b16 %v324
          %v376 = vunpack.c.l.b16 %v325
          %v377 = vunpack.c.l.b16 %v326
          %v378 = vunpack.c.l.b16 %v327
          %v379 = vunpack.c.l.b16 %v328
          %v380 = vunpack.c.l.b16 %v329
          %v381 = vunpack.c.l.b16 %v330
          %v382 = vunpack.c.l.b16 %v331
          %v383 = vpack.c.b16 %v368, %v367
          %v384 = vpack.c.b16 %v370, %v369
          %v385 = vpack.c.b16 %v372, %v371
          %v386 = vpack.c.b16 %v374, %v373
          %v387 = vpack.c.b16 %v376, %v375
          %v388 = vpack.c.b16 %v378, %v377
          %v389 = vpack.c.b16 %v380, %v379
          %v390 = vpack.c.b16 %v382, %v381
          %399 = vmatprep.subr.bf16.mxu0 0
          %400 = vmatpush1.bf16.msra.mxu0 %v383
          %401 = vmatprep.subr.bf16.mxu0 0
          %402 = vmatpush1.bf16.msra.mxu0 %v384
          %403 = vmatprep.subr.bf16.mxu0 0
          %404 = vmatpush1.bf16.msra.mxu0 %v385
          %405 = vmatprep.subr.bf16.mxu0 0
          %406 = vmatpush1.bf16.msra.mxu0 %v386
          %407 = vmatprep.subr.bf16.mxu0 0
          %408 = vmatpush1.bf16.msra.mxu0 %v387
          %409 = vmatprep.subr.bf16.mxu0 0
          %410 = vmatpush1.bf16.msra.mxu0 %v388
          %411 = vmatprep.subr.bf16.mxu0 0
          %412 = vmatpush1.bf16.msra.mxu0 %v389
          %413 = vmatprep.subr.bf16.mxu0 0
          %414 = vmatpush1.bf16.msra.mxu0 %v390
          %415 = vmatprep.subr.bf16.mxu0 0
          %416 = vmatpush1.bf16.msra.mxu0 0
          %417 = vmatprep.subr.bf16.mxu0 0
          %418 = vmatpush1.bf16.msra.mxu0 0
          %419 = vmatprep.subr.bf16.mxu0 0
          %420 = vmatpush1.bf16.msra.mxu0 0
          %421 = vmatprep.subr.bf16.mxu0 0
          %422 = vmatpush1.bf16.msra.mxu0 0
          %423 = vmatprep.subr.bf16.mxu0 0
          %424 = vmatpush1.bf16.msra.mxu0 0
          %425 = vmatprep.subr.bf16.mxu0 0
          %426 = vmatpush1.bf16.msra.mxu0 0
          %427 = vmatprep.subr.bf16.mxu0 0
          %428 = vmatpush1.bf16.msra.mxu0 0
          %429 = vmatprep.subr.bf16.mxu0 0
          %430 = vmatpush1.bf16.msra.mxu0 0
          %431 = vmatprep.mubr.bf16.mxu0 0
          %432 = vmatmul.mubr.bf16.gmra.mrb[0].mxu0 %v347
          %v433 = vpop.f32.mrb[0].mxu0
          %v434 = vadd.f32 %v337, %v433
          %v435 = vpop.f32.mrb[0].mxu0
          %v436 = vpop.f32.mrb[0].mxu0
          %v437 = vadd.f32 %v337, %v436
          %v438 = vpop.f32.mrb[0].mxu0
          %439 = vmatprep.mubr.bf16.mxu0 0
          %440 = vmatmul.mubr.bf16.gmra.mrb[0].mxu0 %v348
          %v441 = vpop.f32.mrb[0].mxu0
          %v442 = vadd.f32 %v337, %v441
          %v443 = vpop.f32.mrb[0].mxu0
          %v444 = vpop.f32.mrb[0].mxu0
          %v445 = vadd.f32 %v337, %v444
          %v446 = vpop.f32.mrb[0].mxu0
          %447 = vdwg.mxu0
          %v448 = vmax.f32 %v434, 0.0
          %v449 = vmax.f32 %v437, 0.0
          %v450 = vmax.f32 %v442, 0.0
          %v451 = vmax.f32 %v445, 0.0
          %v452 = vadd.f32 %v448, %v449
          %v453 = vrot.slane %v452, 4
          %v454 = vadd.f32 %v452, %v453
          %v455 = vrot.slane %v454, 2
          %v456 = vadd.f32 %v454, %v455
          %v457 = vrot.slane %v456, 1
          %v458 = vadd.f32 %v456, %v457
          %v459 = vadd.f32 %v450, %v451
          %v460 = vrot.slane %v459, 4
          %v461 = vadd.f32 %v459, %v460
          %v462 = vrot.slane %v461, 2
          %v463 = vadd.f32 %v461, %v462
          %v464 = vrot.slane %v463, 1
          %v465 = vadd.f32 %v463, %v464
          %v466 = vmul.f32 %v458, 0.0625
          %v467 = vmul.f32 %v465, 0.0625
          %v468 = vpack.c.bf16 %v466, %v466
          %v469 = vpack.c.bf16 %v467, %v467
          %v473 = vunpack.c.l.s4 1966171168
          %v474 = vunpack.c.0.s8 %v473
          %v475 = vlaneseq
          %v476 = vshrl.u32 %v475, 7
          %v477 = vsub.s32 %v474, %v476
          %v478 = vrot.slane %v468, %v477
          %v480 = vunpack.c.l.s4 1966171168
          %v481 = vunpack.c.0.s8 %v480
          %v482 = vlaneseq
          %v483 = vshrl.u32 %v482, 7
          %v484 = vsub.s32 %v481, %v483
          %v485 = vrot.slane %v478, %v484
          %v487 = vunpack.c.l.s4 1966171168
          %v488 = vunpack.c.0.s8 %v487
          %v489 = vlaneseq
          %v490 = vshrl.u32 %v489, 7
          %v491 = vsub.s32 %v488, %v490
          %v492 = vrot.slane %v469, %v491
          %v494 = vunpack.c.l.s4 1966171168
          %v495 = vunpack.c.0.s8 %v494
          %v496 = vlaneseq
          %v497 = vshrl.u32 %v496, 7
          %v498 = vsub.s32 %v495, %v497
          %v499 = vrot.slane %v492, %v498
          %v501 = vunpack.c.l.s4 1935823168
          %v502 = vunpack.c.0.s8 %v501
          %v503 = vlaneseq
          %v504 = vshrl.u32 %v503, 7
          %v505 = vsub.s32 %v502, %v504
          %v506 = vrot.slane %v485, %v505
          %v508 = vunpack.c.l.s4 1935823168
          %v509 = vunpack.c.0.s8 %v508
          %v510 = vlaneseq
          %v511 = vshrl.u32 %v510, 7
          %v512 = vsub.s32 %v509, %v511
          %v513 = vrot.slane %v506, %v512
          %v515 = vunpack.c.l.s4 1935823168
          %v516 = vunpack.c.0.s8 %v515
          %v517 = vlaneseq
          %v518 = vshrl.u32 %v517, 7
          %v519 = vsub.s32 %v516, %v518
          %v520 = vrot.slane %v499, %v519
          %v522 = vunpack.c.l.s4 1935823168
          %v523 = vunpack.c.0.s8 %v522
          %v524 = vlaneseq
          %v525 = vshrl.u32 %v524, 7
          %v526 = vsub.s32 %v523, %v525
          %v527 = vrot.slane %v520, %v526
          %v528 = vunpack.c.l.b16 %v513
          %v529 = vunpack.c.l.b16 %v527
          %v530 = vrot.slane %v529, 7
          %vm531 = vcmask 1041409
          %v532 = vsel %vm531, %v530, %v528
          %v533 = vpack.c.b16 %v532, %v532
          %v535 = vunpack.c.l.s4 1966171168
          %v536 = vunpack.c.0.s8 %v535
          %v537 = vlaneseq
          %v538 = vshrl.u32 %v537, 7
          %v539 = vsub.s32 %v536, %v538
          %v540 = vrot.slane %v533, %v539
          %v542 = vunpack.c.l.s4 1966171168
          %v543 = vunpack.c.0.s8 %v542
          %v544 = vlaneseq
          %v545 = vshrl.u32 %v544, 7
          %v546 = vsub.s32 %v543, %v545
          %v547 = vrot.slane %v540, %v546
          %549 = vst [vmem:[#allocation2] sm:$0x1] %v547
        $region56: #{tpu_custom_call.1} parent=39 // pred_fallthru
          _
        %v550 = vld [vmem:[#allocation2] sm:$0x1]
        %v551 = vld [vmem:[%s273] sm:$0xf]
        %v552 = vld [vmem:[%s273 + $0x4] sm:$0xf]
        %v553 = vld [vmem:[%s273 + $0x8] sm:$0xf]
        %v554 = vld [vmem:[%s273 + $0xc] sm:$0xf]
        %v555 = vld [vmem:[%s273 + $0x10] sm:$0xf]
        %v556 = vld [vmem:[%s273 + $0x14] sm:$0xf]
        %v557 = vld [vmem:[%s273 + $0x18] sm:$0xf]
        %v558 = vld [vmem:[%s273 + $0x1c] sm:$0xf]
        %v559 = vld [vmem:[%s273 + $0x20] sm:$0xf]
        %v560 = vld [vmem:[%s273 + $0x24] sm:$0xf]
        %v561 = vld [vmem:[%s273 + $0x28] sm:$0xf]
        %v562 = vld [vmem:[%s273 + $0x2c] sm:$0xf]
        %v563 = vld [vmem:[%s273 + $0x30] sm:$0xf]
        %v564 = vld [vmem:[%s273 + $0x34] sm:$0xf]
        %v565 = vld [vmem:[%s273 + $0x38] sm:$0xf]
        %v566 = vld [vmem:[%s273 + $0x3c] sm:$0xf]
        %v567 = vld [vmem:[%s306] sm:$0x1]
        %v569 = vlaneseq
        %v570 = vshrl.u32 %v569, 7
        %v571 = vsub.s32 0, %v570
        %v572 = vrot.slane %v567, %v571
        %v590 = vunpack.c.l.b16 %v551
        %v591 = vunpack.c.l.b16 %v552
        %v592 = vunpack.c.l.b16 %v553
        %v593 = vunpack.c.l.b16 %v554
        %v594 = vunpack.c.l.b16 %v555
        %v595 = vunpack.c.l.b16 %v556
        %v596 = vunpack.c.l.b16 %v557
        %v597 = vunpack.c.l.b16 %v558
        %v598 = vunpack.c.l.b16 %v559
        %v599 = vunpack.c.l.b16 %v560
        %v600 = vunpack.c.l.b16 %v561
        %v601 = vunpack.c.l.b16 %v562
        %v602 = vunpack.c.l.b16 %v563
        %v603 = vunpack.c.l.b16 %v564
        %v604 = vunpack.c.l.b16 %v565
        %v605 = vunpack.c.l.b16 %v566
        %v606 = vpack.c.b16 %v591, %v590
        %v607 = vpack.c.b16 %v593, %v592
        %v608 = vpack.c.b16 %v595, %v594
        %v609 = vpack.c.b16 %v597, %v596
        %v610 = vpack.c.b16 %v599, %v598
        %v611 = vpack.c.b16 %v601, %v600
        %v612 = vpack.c.b16 %v603, %v602
        %v613 = vpack.c.b16 %v605, %v604
        %622 = vmatprep.subr.bf16.mxu0 0
        %623 = vmatpush1.bf16.msra.mxu0 %v606
        %624 = vmatprep.subr.bf16.mxu0 0
        %625 = vmatpush1.bf16.msra.mxu0 %v607
        %626 = vmatprep.subr.bf16.mxu0 0
        %627 = vmatpush1.bf16.msra.mxu0 %v608
        %628 = vmatprep.subr.bf16.mxu0 0
        %629 = vmatpush1.bf16.msra.mxu0 %v609
        %630 = vmatprep.subr.bf16.mxu0 0
        %631 = vmatpush1.bf16.msra.mxu0 %v610
        %632 = vmatprep.subr.bf16.mxu0 0
        %633 = vmatpush1.bf16.msra.mxu0 %v611
        %634 = vmatprep.subr.bf16.mxu0 0
        %635 = vmatpush1.bf16.msra.mxu0 %v612
        %636 = vmatprep.subr.bf16.mxu0 0
        %637 = vmatpush1.bf16.msra.mxu0 %v613
        %638 = vmatprep.subr.bf16.mxu0 0
        %639 = vmatpush1.bf16.msra.mxu0 0
        %640 = vmatprep.subr.bf16.mxu0 0
        %641 = vmatpush1.bf16.msra.mxu0 0
        %642 = vmatprep.subr.bf16.mxu0 0
        %643 = vmatpush1.bf16.msra.mxu0 0
        %644 = vmatprep.subr.bf16.mxu0 0
        %645 = vmatpush1.bf16.msra.mxu0 0
        %646 = vmatprep.subr.bf16.mxu0 0
        %647 = vmatpush1.bf16.msra.mxu0 0
        %648 = vmatprep.subr.bf16.mxu0 0
        %649 = vmatpush1.bf16.msra.mxu0 0
        %650 = vmatprep.subr.bf16.mxu0 0
        %651 = vmatpush1.bf16.msra.mxu0 0
        %652 = vmatprep.subr.bf16.mxu0 0
        %653 = vmatpush1.bf16.msra.mxu0 0
        %654 = vmatprep.mubr.bf16.mxu0 0
        %655 = vmatmul.mubr.bf16.gmra.mrb[0].mxu0 %v550
        %v656 = vpop.f32.mrb[0].mxu0
        %v657 = vadd.f32 %v572, %v656
        %v658 = vpop.f32.mrb[0].mxu0
        %v659 = vpop.f32.mrb[0].mxu0
        %v660 = vpop.f32.mrb[0].mxu0
        %661 = vdwg.mxu0
        %v662 = vmax.f32 %v657, 0.0
        %663 = vst [vmem:[%s302] sm:$0x3] %v662
        %s664 = sand.u32 %s163, 1
        %s665 = scalar_lea.sflag [#allocation5], %s664
        %s666 = sand.u32 %s163, 1
        %s667 = smul.addr %s666, 2
        %s668 = scalar_lea.vmem [#allocation9], %s667
        // Predicated region
        $region57: #{tpu_custom_call.1} parent=39 // pred_check
          %p669 = pneg %p173
        $region58: #{tpu_custom_call.1} parent=39 // pred_check_branch
          %671 = sbr.rel (%p669) target = $region60
        $region59: #{tpu_custom_call.1} parent=39 // pred_region
          %s673 = ssub.s32 32, 32
          %674 = vsyncadd %s665, %s673
          %s675 = smul.addr %s25, 2
          %s676 = sadd.s32 %s26, %s675
          %s677 = smul.addr %s676, 32
          %s678 = scalar_lea.hbm %s5, %s677
          %s680 = sshll.u32 %s668, 4
          %s681 = int_to_ptr.vmem [resolvable:$true] %s680
          %683 = dma.vmem_to_hbm [thread:$0]  %s681, 32, %s678, %s665
        $region60: #{tpu_custom_call.1} parent=39 // pred_fallthru
          _
      $region40: #{tpu_custom_call.1} parent=5 // pred_fallthru
        _
      %p684 = scmp.le.s32.totalorder 2, %s16
      // Predicated region
      $region61: #{tpu_custom_call.1} parent=5 // pred_check
        %p685 = pneg %p684
      $region62: #{tpu_custom_call.1} parent=5 // pred_check_branch
        %687 = sbr.rel (%p685) target = $region64
      $region63: #{tpu_custom_call.1} parent=5 // pred_region
        %s688 = ssub.s32 %s16, 2
        // Predicated region
        $region65: #{tpu_custom_call.1} parent=63 // pred_check
          %p689 = pneg %p179
        $region66: #{tpu_custom_call.1} parent=63 // pred_check_branch
          %691 = sbr.rel (%p689) target = $region68
        $region67: #{tpu_custom_call.1} parent=63 // pred_region
          %s692 = sand.u32 %s164, 1
          %s693 = scalar_lea.sflag [#allocation5], %s692
          %s694 = sand.u32 %s164, 1
          %s695 = smul.addr %s694, 2
          %s696 = scalar_lea.vmem [#allocation9], %s695
          %697 = dma.done %s693, 32
        $region68: #{tpu_custom_call.1} parent=63 // pred_fallthru
          _
      $region64: #{tpu_custom_call.1} parent=5 // pred_fallthru
        _
    $region6: #{tpu_custom_call.1} parent=1 // loop_footer
      %s20 = sadd.s32 1, %s16
    $region7: #{tpu_custom_call.1} parent=1 // loop_footer_branch
      %15 = sbr.rel target = $region3
    $region8: #{tpu_custom_call.1} parent=1 // loop_exit
      _
    %698 = vsyncpa [#allocation4], 1
    %s699 = scalar_lea.sflag [#allocation4], 1
    %700 = vsyncpa %s699, 1
    %701 = vsyncpa [#allocation7], 1
    %702 = vsyncpa [#allocation5], 1
    %s703 = scalar_lea.sflag [#allocation5], 1
    %704 = vsyncpa %s703, 1

</llo_original>
